<compile_context>
chip_gen: v6e
topology: v6e:2x2x1
jax: 0.10.0
libtpu: 0.0.40
codegen_flags: <defaults>
</compile_context>

<pallas_src>
import functools

import jax
import jax.numpy as jnp
from jax.experimental import pallas as pl
from jax.experimental.pallas import tpu as pltpu


LANE = 128           # padded lane width for hidden layers inside the kernel
HID1, HID2 = 64, 32  # true hidden widths of the PyTorch module
TB_CAP = 4096        # max batch-tile rows (keeps per-step VMEM ~ a few MiB)


def _round_up(x, m):
    return (x + m - 1) // m * m


# ---------------------------------------------------------------------------
# Kernel
# ---------------------------------------------------------------------------
def betting_nn_kernel(x_ref, w_ref, b_ref, o_ref, *, input_size, in_p,
                      num_classes):
    """x_ref: (TB, input_size) f32, w_ref: (in_p + 2*LANE, LANE) bf16,
    b_ref: (3, LANE) f32, o_ref: (TB, num_classes) f32."""
    # Cast to bf16 in-kernel (MXU operands); no wrapper-side pad/cast pass.
    x = x_ref[...].astype(jnp.bfloat16)              # (TB, input_size)

    # Static slices of the single resident weight blob (zero runtime cost).
    w1 = w_ref[0:input_size, :]                      # (input_size, 128) bf16
    w2 = w_ref[in_p:in_p + LANE, :]                  # (128, 128) bf16
    w3 = w_ref[in_p + LANE:in_p + 2 * LANE, :]       # (128, 128) bf16
    b = b_ref[...]                                   # (3, 128) f32

    # fc1 + ReLU   (bf16 MXU matmul, f32 accumulate, f32 elementwise)
    h1 = jnp.dot(x, w1, preferred_element_type=jnp.float32) + b[0:1, :]
    h1 = jnp.maximum(h1, 0.0).astype(jnp.bfloat16)

    # fc2 + ReLU
    h2 = jnp.dot(h1, w2, preferred_element_type=jnp.float32) + b[1:2, :]
    h2 = jnp.maximum(h2, 0.0).astype(jnp.bfloat16)

    # fc3 (logits, no activation) -> narrow store of only the real classes.
    out = jnp.dot(h2, w3, preferred_element_type=jnp.float32) + b[2:3, :]
    o_ref[...] = out[:, :num_classes].astype(o_ref.dtype)


# ---------------------------------------------------------------------------
# Parameter packing (done once, outside the hot path)
# ---------------------------------------------------------------------------
def pack_params(params, input_size, num_classes):
    """Zero-pad hidden/output dims to 128 lanes; concat weights into one bf16
    blob and biases into one f32 (3, 128) blob."""
    assert 1 <= num_classes <= LANE, "num_classes must be <= 128 (single lane tile)"
    assert params["w1"].shape == (input_size, HID1)
    assert params["w2"].shape == (HID1, HID2)
    assert params["w3"].shape == (HID2, num_classes)

    in_p = _round_up(max(input_size, 1), 16)         # bf16 sublane alignment

    w1 = jnp.zeros((in_p, LANE), jnp.float32).at[:input_size, :HID1].set(params["w1"])
    w2 = jnp.zeros((LANE, LANE), jnp.float32).at[:HID1, :HID2].set(params["w2"])
    w3 = jnp.zeros((LANE, LANE), jnp.float32).at[:HID2, :num_classes].set(params["w3"])
    w_blob = jnp.concatenate([w1, w2, w3], axis=0).astype(jnp.bfloat16)

    b_blob = jnp.zeros((3, LANE), jnp.float32)
    b_blob = b_blob.at[0, :HID1].set(params["b1"][0])
    b_blob = b_blob.at[1, :HID2].set(params["b2"][0])
    b_blob = b_blob.at[2, :num_classes].set(params["b3"][0])
    return w_blob, b_blob


# ---------------------------------------------------------------------------
# Wrapper
# ---------------------------------------------------------------------------
def _choose_batch_tile(batch):
    """Batch tile: multiple of 8, capped at TB_CAP, aiming for >=2 (ideally
    even) grid steps at large batch so v7x can shard across both TCs."""
    tb = min(TB_CAP, _round_up(max(pl.cdiv(batch, 2), 8), 8))
    steps = pl.cdiv(batch, tb)
    if steps > 1 and steps % 2 == 1:                 # avoid an idle TC on v7x
        tb = max(8, _round_up(pl.cdiv(batch, steps + 1), 8))
    return tb


def betting_nn_forward(x, w_blob, b_blob, *, num_classes):
    """x: (batch, input_size) f32. Returns (batch, num_classes) f32."""
    batch, input_size = x.shape
    in_p = w_blob.shape[0] - 2 * LANE
    assert 1 <= num_classes <= LANE, "num_classes must be <= 128"
    assert 1 <= input_size <= in_p, "x feature dim inconsistent with packed weights"
    assert b_blob.shape == (3, LANE)

    tb = _choose_batch_tile(batch)
    grid = (pl.cdiv(batch, tb),)                     # ragged last block is masked

    kernel = functools.partial(betting_nn_kernel, input_size=input_size,
                               in_p=in_p, num_classes=num_classes)

    flops = 2 * batch * (input_size * HID1 + HID1 * HID2 + HID2 * num_classes)
    bytes_accessed = (x.size * 4 + w_blob.size * 2 + b_blob.size * 4
                      + batch * num_classes * 4)

    out = pl.pallas_call(
        kernel,
        out_shape=jax.ShapeDtypeStruct((batch, num_classes), jnp.float32),
        grid=grid,
        in_specs=[
            pl.BlockSpec((tb, input_size), lambda i: (i, 0)),   # x: tiled on batch
            pl.BlockSpec(w_blob.shape, lambda i: (0, 0)),       # weights: resident
            pl.BlockSpec(b_blob.shape, lambda i: (0, 0)),       # biases: resident
        ],
        out_specs=pl.BlockSpec((tb, num_classes), lambda i: (i, 0)),  # narrow store
        compiler_params=pltpu.CompilerParams(
            dimension_semantics=("parallel",),       # shard grid across v7x TCs
            vmem_limit_bytes=32 * 1024 * 1024,       # explicit: safe on v7x too
        ),
        cost_estimate=pl.CostEstimate(
            flops=flops, transcendentals=0, bytes_accessed=bytes_accessed),
    )(x, w_blob, b_blob)
    return out


# ---------------------------------------------------------------------------
# Init + reference
# ---------------------------------------------------------------------------
def init_params(key, input_size, num_classes):
    """nn.Linear-equivalent init; weights stored as (in, out) so y = x @ W + b."""
    k1, k2, k3, k4, k5, k6 = jax.random.split(key, 6)

    def lin_init(kw, kb, fan_in, fan_out):
        bound = 1.0 / jnp.sqrt(jnp.float32(fan_in))
        w = jax.random.uniform(kw, (fan_in, fan_out), jnp.float32,
                               minval=-bound, maxval=bound)
        b = jax.random.uniform(kb, (1, fan_out), jnp.float32,
                               minval=-bound, maxval=bound)
        return w, b

    w1, b1 = lin_init(k1, k2, input_size, HID1)
    w2, b2 = lin_init(k3, k4, HID1, HID2)
    w3, b3 = lin_init(k5, k6, HID2, num_classes)
    return {"w1": w1, "b1": b1, "w2": w2, "b2": b2, "w3": w3, "b3": b3}


def reference_forward(x, p):
    h1 = jnp.maximum(x @ p["w1"] + p["b1"], 0.0)
    h2 = jnp.maximum(h1 @ p["w2"] + p["b2"], 0.0)
    return h2 @ p["w3"] + p["b3"]


if __name__ == "__main__":
    input_size = 16    # feature vector length per sample
    num_classes = 3    # home-win / draw / away-win
    batch = 8

    key = jax.random.PRNGKey(0)
    kx, kp = jax.random.split(key)
    x = jax.random.normal(kx, (batch, input_size), jnp.float32)
    params = init_params(kp, input_size, num_classes)
    w_blob, b_blob = pack_params(params, input_size, num_classes)

    out = betting_nn_forward(x, w_blob, b_blob, num_classes=num_classes)
    out = jax.block_until_ready(out)

    ref = reference_forward(x, params)
    assert out.shape == (batch, num_classes)
    # bf16 matmul operands with f32 accumulation -> loose-ish tolerance vs f32.
    assert jnp.allclose(out, ref, atol=5e-2, rtol=5e-2), (
        f"max abs err {jnp.max(jnp.abs(out - ref))}")

    print("KERNEL_OK")
</pallas_src>

<mosaic_0001>
module attributes {stable_mosaic.version = 11 : i64} {
  func.func @betting_nn_kernel(%arg0: i32, %arg1: memref<8x16xf32, #tpu.memory_space<vmem>>, %arg2: memref<272x128xbf16, #tpu.memory_space<vmem>>, %arg3: memref<3x128xf32, #tpu.memory_space<vmem>>, %arg4: memref<8x3xf32, #tpu.memory_space<vmem>>) attributes {dimension_semantics = [#tpu.dimension_semantics<parallel>], iteration_bounds = array<i64: 1>, scalar_prefetch = 0 : i64, scratch_operands = 0 : i64, tpu.core_type = #tpu.core_type<tc>, window_params = [{transform_indices = @transform_0, window_bounds = array<i64: 8, 16>}, {pipeline_mode = #tpu.pipeline_mode<synchronous>, transform_indices = @transform_1, window_bounds = array<i64: 272, 128>}, {pipeline_mode = #tpu.pipeline_mode<synchronous>, transform_indices = @transform_2, window_bounds = array<i64: 3, 128>}, {transform_indices = @transform_3, window_bounds = array<i64: 8, 3>}]} {
    %c0 = arith.constant 0 : index
    %c0_0 = arith.constant 0 : index
    %0 = vector.load %arg1[%c0, %c0_0] : memref<8x16xf32, #tpu.memory_space<vmem>>, vector<8x16xf32>
    %1 = arith.truncf %0 : vector<8x16xf32> to vector<8x16xbf16>
    %c0_1 = arith.constant 0 : index
    %c0_2 = arith.constant 0 : index
    %2 = vector.load %arg2[%c0_1, %c0_2] : memref<272x128xbf16, #tpu.memory_space<vmem>>, vector<16x128xbf16>
    %c16 = arith.constant 16 : index
    %c0_3 = arith.constant 0 : index
    %3 = vector.load %arg2[%c16, %c0_3] : memref<272x128xbf16, #tpu.memory_space<vmem>>, vector<128x128xbf16>
    %c144 = arith.constant 144 : index
    %c0_4 = arith.constant 0 : index
    %4 = vector.load %arg2[%c144, %c0_4] : memref<272x128xbf16, #tpu.memory_space<vmem>>, vector<128x128xbf16>
    %c0_5 = arith.constant 0 : index
    %c0_6 = arith.constant 0 : index
    %5 = vector.load %arg3[%c0_5, %c0_6] : memref<3x128xf32, #tpu.memory_space<vmem>>, vector<3x128xf32>
    %cst = arith.constant dense<0.000000e+00> : vector<8x128xf32>
    %6 = tpu.matmul %1, %2, %cst {dimension_numbers = #tpu.dot_dimension_numbers<[1], [0], [0], [1], [0, 0, 1, 1], [], []>} : vector<8x16xbf16>, vector<16x128xbf16>, vector<8x128xf32> -> vector<8x128xf32>
    %7 = vector.extract_strided_slice %5 {offsets = [0, 0], sizes = [1, 128], strides = [1, 1]} : vector<3x128xf32> to vector<1x128xf32>
    %8 = vector.broadcast %7 : vector<1x128xf32> to vector<8x128xf32>
    %9 = arith.addf %6, %8 : vector<8x128xf32>
    %cst_7 = arith.constant 0.000000e+00 : f32
    %10 = vector.broadcast %cst_7 : f32 to vector<8x128xf32>
    %11 = arith.maximumf %9, %10 : vector<8x128xf32>
    %12 = arith.truncf %11 : vector<8x128xf32> to vector<8x128xbf16>
    %cst_8 = arith.constant dense<0.000000e+00> : vector<8x128xf32>
    %13 = tpu.matmul %12, %3, %cst_8 {dimension_numbers = #tpu.dot_dimension_numbers<[1], [0], [0], [1], [0, 0, 1, 1], [], []>} : vector<8x128xbf16>, vector<128x128xbf16>, vector<8x128xf32> -> vector<8x128xf32>
    %14 = vector.extract_strided_slice %5 {offsets = [1, 0], sizes = [1, 128], strides = [1, 1]} : vector<3x128xf32> to vector<1x128xf32>
    %15 = vector.broadcast %14 : vector<1x128xf32> to vector<8x128xf32>
    %16 = arith.addf %13, %15 : vector<8x128xf32>
    %cst_9 = arith.constant 0.000000e+00 : f32
    %17 = vector.broadcast %cst_9 : f32 to vector<8x128xf32>
    %18 = arith.maximumf %16, %17 : vector<8x128xf32>
    %19 = arith.truncf %18 : vector<8x128xf32> to vector<8x128xbf16>
    %cst_10 = arith.constant dense<0.000000e+00> : vector<8x128xf32>
    %20 = tpu.matmul %19, %4, %cst_10 {dimension_numbers = #tpu.dot_dimension_numbers<[1], [0], [0], [1], [0, 0, 1, 1], [], []>} : vector<8x128xbf16>, vector<128x128xbf16>, vector<8x128xf32> -> vector<8x128xf32>
    %21 = vector.extract_strided_slice %5 {offsets = [2, 0], sizes = [1, 128], strides = [1, 1]} : vector<3x128xf32> to vector<1x128xf32>
    %22 = vector.broadcast %21 : vector<1x128xf32> to vector<8x128xf32>
    %23 = arith.addf %20, %22 : vector<8x128xf32>
    %24 = vector.extract_strided_slice %23 {offsets = [0, 0], sizes = [8, 3], strides = [1, 1]} : vector<8x128xf32> to vector<8x3xf32>
    %c0_11 = arith.constant 0 : index
    %c0_12 = arith.constant 0 : index
    %25 = vector.load %arg4[%c0_11, %c0_12] : memref<8x3xf32, #tpu.memory_space<vmem>>, vector<8x3xf32>
    tpu.vector_store %arg4[%c0_11, %c0_12], %24 {strides = array<i32>} : memref<8x3xf32, #tpu.memory_space<vmem>>, vector<8x3xf32>,
    return
  }
  func.func @transform_0(%arg0: i32) -> (i32, i32) {
    %c0_i32 = arith.constant 0 : i32
    %c0_i32_0 = arith.constant 0 : i32
    return %arg0, %c0_i32 : i32, i32
  }
  func.func @transform_1(%arg0: i32) -> (i32, i32) {
    %c0_i32 = arith.constant 0 : i32
    %c0_i32_0 = arith.constant 0 : i32
    %c0_i32_1 = arith.constant 0 : i32
    return %c0_i32, %c0_i32_0 : i32, i32
  }
  func.func @transform_2(%arg0: i32) -> (i32, i32) {
    %c0_i32 = arith.constant 0 : i32
    %c0_i32_0 = arith.constant 0 : i32
    %c0_i32_1 = arith.constant 0 : i32
    return %c0_i32, %c0_i32_0 : i32, i32
  }
  func.func @transform_3(%arg0: i32) -> (i32, i32) {
    %c0_i32 = arith.constant 0 : i32
    %c0_i32_0 = arith.constant 0 : i32
    return %arg0, %c0_i32 : i32, i32
  }
}

</mosaic_0001>

<llo_original>
// kernel: tpu_custom_call.1
$region0: #{tpu_custom_call.1}
  #allocation0 [shape = 'u32[]', space=smem, size = 0x4, offset = 0x4, fixed_abs, tag = 'smem constant byte address 0x4 - core index']
  #allocation1 [shape = 'u32[144,128]{1,0:T(1,128)}', space=vmem, size = 0x12000, scoped, tag = 'internal scratch']
  %s0 = inlined_call_operand.hbm [shape: f32[8,16], index: 0, kind: input, shape index: {}]
  %s1 = inlined_call_operand.hbm [shape: bf16[272,128], index: 1, kind: input, shape index: {}]
  %s2 = inlined_call_operand.hbm [shape: f32[3,128], index: 2, kind: input, shape index: {}]
  %s3 = inlined_call_operand.vmem [shape: f32[8,3], index: 3, kind: output, shape index: {}]
  %s4 = sld [smem:[#allocation0]]
  $region34: #{tpu_custom_call.1} parent=0
    _
  %s6 = ssub.s32 1, %s4
  %s7 = scalar_select 0, %s6, %s4
  $region1: #{tpu_custom_call.1} parent=0
    #allocation2 [shape = 'u8[4096]{0}', space=vmem, size = 0x1000, scoped, tag = 'input window, operand 0, single buffered']
    #allocation3 [shape = 's32[1]{0}', space=sflag, size = 0x4, scoped, tag = 'scoped memory for tpu_custom_call.1']
    #allocation4 [shape = 'u8[69632]{0}', space=vmem, size = 0x11000, scoped, tag = 'input window, operand 1, single buffered']
    #allocation5 [shape = 's32[1]{0}', space=sflag, size = 0x4, scoped, tag = 'scoped memory for tpu_custom_call.1']
    #allocation6 [shape = 'u8[2048]{0}', space=vmem, size = 0x800, scoped, tag = 'input window, operand 2, single buffered']
    %8 = vsyncpa [#allocation3], 0
    %9 = vsyncpa [#allocation5], 0
    // Predicated region
    $region2: #{tpu_custom_call.1} parent=1 // pred_check
      _
    $region3: #{tpu_custom_call.1} parent=1 // pred_check_branch
      %11 = sbr.rel (0) target = $region5
    $region4: #{tpu_custom_call.1} parent=1 // pred_region
      %s13 = ssub.s32 128, 128
      %14 = vsyncadd [#allocation3], %s13
      %s16 = sshll.u32 [#allocation2], 4
      %s17 = int_to_ptr.vmem [resolvable:$true] %s16
      %19 = dma.hbm_to_vmem [thread:$0]  %s0, 128, %s17, [#allocation3]
    $region5: #{tpu_custom_call.1} parent=1 // pred_fallthru
      _
    // Predicated region
    $region6: #{tpu_custom_call.1} parent=1 // pred_check
      _
    $region7: #{tpu_custom_call.1} parent=1 // pred_check_branch
      %21 = sbr.rel (0) target = $region9
    $region8: #{tpu_custom_call.1} parent=1 // pred_region
      %s23 = ssub.s32 2176, 2176
      %24 = vsyncadd [#allocation5], %s23
      %s25 = sshll.u32 [#allocation4], 4
      %s26 = int_to_ptr.vmem [resolvable:$true] %s25
      %31 = dma.hbm_to_vmem [thread:$0]  %s1, 2176, %s26, [#allocation5], 64, 64, 4
    $region9: #{tpu_custom_call.1} parent=1 // pred_fallthru
      _
    // Predicated region
    $region10: #{tpu_custom_call.1} parent=1 // pred_check
      _
    $region11: #{tpu_custom_call.1} parent=1 // pred_check_branch
      %33 = sbr.rel (0) target = $region13
    $region12: #{tpu_custom_call.1} parent=1 // pred_region
      %s35 = ssub.s32 64, 64
      %36 = vsyncadd [#allocation5], %s35
      %s38 = sshll.u32 [#allocation6], 4
      %s39 = int_to_ptr.vmem [resolvable:$true] %s38
      %41 = dma.hbm_to_vmem [thread:$0]  %s2, 64, %s39, [#allocation5]
    $region13: #{tpu_custom_call.1} parent=1 // pred_fallthru
      _
    // Predicated region
    $region14: #{tpu_custom_call.1} parent=1 // pred_check
      _
    $region15: #{tpu_custom_call.1} parent=1 // pred_check_branch
      %43 = sbr.rel (0) target = $region17
    $region16: #{tpu_custom_call.1} parent=1 // pred_region
      %44 = dma.done [#allocation3], 128
    $region17: #{tpu_custom_call.1} parent=1 // pred_fallthru
      _
    // Predicated region
    $region18: #{tpu_custom_call.1} parent=1 // pred_check
      _
    $region19: #{tpu_custom_call.1} parent=1 // pred_check_branch
      %46 = sbr.rel (0) target = $region21
    $region20: #{tpu_custom_call.1} parent=1 // pred_region
      %47 = dma.done [#allocation5], 2176
    $region21: #{tpu_custom_call.1} parent=1 // pred_fallthru
      _
    // Predicated region
    $region22: #{tpu_custom_call.1} parent=1 // pred_check
      _
    $region23: #{tpu_custom_call.1} parent=1 // pred_check_branch
      %49 = sbr.rel (0) target = $region25
    $region24: #{tpu_custom_call.1} parent=1 // pred_region
      %50 = dma.done [#allocation5], 64
    $region25: #{tpu_custom_call.1} parent=1 // pred_fallthru
      _
    %v52 = vld [vmem:[#allocation2] sm:$0xff]
    %v53 = vpack.c.bf16 %v52, %v52
    %v54 = vld [vmem:[#allocation4] sm:$0xf]
    %v55 = vld [vmem:[#allocation4 + $0x4] sm:$0xf]
    %v56 = vld [vmem:[#allocation4 + $0x8] sm:$0xf]
    %v57 = vld [vmem:[#allocation4 + $0xc] sm:$0xf]
    %v58 = vld [vmem:[#allocation4 + $0x10] sm:$0xf]
    %v59 = vld [vmem:[#allocation4 + $0x14] sm:$0xf]
    %v60 = vld [vmem:[#allocation4 + $0x18] sm:$0xf]
    %v61 = vld [vmem:[#allocation4 + $0x1c] sm:$0xf]
    %v62 = vld [vmem:[#allocation4 + $0x20] sm:$0xf]
    %v63 = vld [vmem:[#allocation4 + $0x24] sm:$0xf]
    %v64 = vld [vmem:[#allocation4 + $0x28] sm:$0xf]
    %v65 = vld [vmem:[#allocation4 + $0x2c] sm:$0xf]
    %v66 = vld [vmem:[#allocation4 + $0x30] sm:$0xf]
    %v67 = vld [vmem:[#allocation4 + $0x34] sm:$0xf]
    %v68 = vld [vmem:[#allocation4 + $0x38] sm:$0xf]
    %v69 = vld [vmem:[#allocation4 + $0x3c] sm:$0xf]
    %v70 = vld [vmem:[#allocation4 + $0x40] sm:$0xf]
    %v71 = vld [vmem:[#allocation4 + $0x44] sm:$0xf]
    %v72 = vld [vmem:[#allocation4 + $0x48] sm:$0xf]
    %v73 = vld [vmem:[#allocation4 + $0x4c] sm:$0xf]
    %v74 = vld [vmem:[#allocation4 + $0x50] sm:$0xf]
    %v75 = vld [vmem:[#allocation4 + $0x54] sm:$0xf]
    %v76 = vld [vmem:[#allocation4 + $0x58] sm:$0xf]
    %v77 = vld [vmem:[#allocation4 + $0x5c] sm:$0xf]
    %v78 = vld [vmem:[#allocation4 + $0x60] sm:$0xf]
    %v79 = vld [vmem:[#allocation4 + $0x64] sm:$0xf]
    %v80 = vld [vmem:[#allocation4 + $0x68] sm:$0xf]
    %v81 = vld [vmem:[#allocation4 + $0x6c] sm:$0xf]
    %v82 = vld [vmem:[#allocation4 + $0x70] sm:$0xf]
    %v83 = vld [vmem:[#allocation4 + $0x74] sm:$0xf]
    %v84 = vld [vmem:[#allocation4 + $0x78] sm:$0xf]
    %v85 = vld [vmem:[#allocation4 + $0x7c] sm:$0xf]
    %v86 = vld [vmem:[#allocation4 + $0x80] sm:$0xf]
    %v87 = vld [vmem:[#allocation4 + $0x84] sm:$0xf]
    %v88 = vld [vmem:[#allocation6] sm:$0x7]
    %v89 = vlaneseq
    %v90 = vshrl.u32 %v89, 7
    %v91 = vsub.s32 0, %v90
    %v92 = vrot.slane %v88, %v91
    %v95 = vunpack.c.l.b16 %v54
    %v96 = vunpack.c.l.b16 %v55
    %v97 = vpack.c.b16 %v96, %v95
    %vm99 = vcmask 130048
    %v101 = vsel %vm99, %v53, 0
    %103 = vmatprep.subr.bf16.mxu0 0
    %104 = vmatpush1.bf16.msra.mxu0 0
    %105 = vmatprep.subr.bf16.mxu0 0
    %106 = vmatpush1.bf16.msra.mxu0 0
    %107 = vmatprep.subr.bf16.mxu0 0
    %108 = vmatpush1.bf16.msra.mxu0 0
    %109 = vmatprep.subr.bf16.mxu0 0
    %110 = vmatpush1.bf16.msra.mxu0 0
    %111 = vmatprep.subr.bf16.mxu0 0
    %112 = vmatpush1.bf16.msra.mxu0 0
    %113 = vmatprep.subr.bf16.mxu0 0
    %114 = vmatpush1.bf16.msra.mxu0 0
    %115 = vmatprep.subr.bf16.mxu0 0
    %116 = vmatpush1.bf16.msra.mxu0 0
    %117 = vmatprep.subr.bf16.mxu0 0
    %118 = vmatpush1.bf16.msra.mxu0 %v97
    %119 = vmatprep.subr.bf16.mxu0 0
    %120 = vmatpush2.bf16.msra.mxu0 0
    %121 = vmatprep.subr.bf16.mxu0 0
    %122 = vmatpush2.bf16.msra.mxu0 0
    %123 = vmatprep.subr.bf16.mxu0 0
    %124 = vmatpush2.bf16.msra.mxu0 0
    %125 = vmatprep.subr.bf16.mxu0 0
    %126 = vmatpush2.bf16.msra.mxu0 0
    %127 = vmatprep.subr.bf16.mxu0 0
    %128 = vmatpush2.bf16.msra.mxu0 0
    %129 = vmatprep.subr.bf16.mxu0 0
    %130 = vmatpush2.bf16.msra.mxu0 0
    %131 = vmatprep.subr.bf16.mxu0 0
    %132 = vmatpush2.bf16.msra.mxu0 0
    %133 = vmatprep.subr.bf16.mxu0 0
    %134 = vmatpush2.bf16.msra.mxu0 0
    %135 = vmatprep.mubr.bf16.mxu0 0
    %136 = vmatmul.mubr.bf16.gmra.mxu0 %v101
    %v137 = vpop.f32.mrf.mxu0
    %v138 = vadd.f32 %v92, %v137
    %v139 = vpop.f32.mrf.mxu0
    %v140 = vpop.f32.mrf.mxu0
    %v141 = vpop.f32.mrf.mxu0
    %142 = vdwg.mxu0
    %v143 = vmax.f32 %v138, 0.0
    %v144 = vpack.c.bf16 %v143, %v143
    %v145 = vlaneseq
    %v146 = vshrl.u32 %v145, 7
    %v147 = vsub.s32 1, %v146
    %v148 = vrot.slane %v88, %v147
    %v165 = vunpack.c.l.b16 %v56
    %v166 = vunpack.c.l.b16 %v57
    %v167 = vunpack.c.l.b16 %v58
    %v168 = vunpack.c.l.b16 %v59
    %v169 = vunpack.c.l.b16 %v60
    %v170 = vunpack.c.l.b16 %v61
    %v171 = vunpack.c.l.b16 %v62
    %v172 = vunpack.c.l.b16 %v63
    %v173 = vunpack.c.l.b16 %v64
    %v174 = vunpack.c.l.b16 %v65
    %v175 = vunpack.c.l.b16 %v66
    %v176 = vunpack.c.l.b16 %v67
    %v177 = vunpack.c.l.b16 %v68
    %v178 = vunpack.c.l.b16 %v69
    %v179 = vunpack.c.l.b16 %v70
    %v180 = vunpack.c.l.b16 %v71
    %v181 = vpack.c.b16 %v166, %v165
    %v182 = vpack.c.b16 %v168, %v167
    %v183 = vpack.c.b16 %v170, %v169
    %v184 = vpack.c.b16 %v172, %v171
    %v185 = vpack.c.b16 %v174, %v173
    %v186 = vpack.c.b16 %v176, %v175
    %v187 = vpack.c.b16 %v178, %v177
    %v188 = vpack.c.b16 %v180, %v179
    %197 = vmatprep.subr.bf16.mxu0 0
    %198 = vmatpush1.bf16.msra.mxu0 %v188
    %199 = vmatprep.subr.bf16.mxu0 0
    %200 = vmatpush1.bf16.msra.mxu0 %v187
    %201 = vmatprep.subr.bf16.mxu0 0
    %202 = vmatpush1.bf16.msra.mxu0 %v186
    %203 = vmatprep.subr.bf16.mxu0 0
    %204 = vmatpush1.bf16.msra.mxu0 %v185
    %205 = vmatprep.subr.bf16.mxu0 0
    %206 = vmatpush1.bf16.msra.mxu0 %v184
    %207 = vmatprep.subr.bf16.mxu0 0
    %208 = vmatpush1.bf16.msra.mxu0 %v183
    %209 = vmatprep.subr.bf16.mxu0 0
    %210 = vmatpush1.bf16.msra.mxu0 %v182
    %211 = vmatprep.subr.bf16.mxu0 0
    %212 = vmatpush1.bf16.msra.mxu0 %v181
    %213 = vmatprep.subr.bf16.mxu0 0
    %214 = vmatpush2.bf16.msra.mxu0 0
    %215 = vmatprep.subr.bf16.mxu0 0
    %216 = vmatpush2.bf16.msra.mxu0 0
    %217 = vmatprep.subr.bf16.mxu0 0
    %218 = vmatpush2.bf16.msra.mxu0 0
    %219 = vmatprep.subr.bf16.mxu0 0
    %220 = vmatpush2.bf16.msra.mxu0 0
    %221 = vmatprep.subr.bf16.mxu0 0
    %222 = vmatpush2.bf16.msra.mxu0 0
    %223 = vmatprep.subr.bf16.mxu0 0
    %224 = vmatpush2.bf16.msra.mxu0 0
    %225 = vmatprep.subr.bf16.mxu0 0
    %226 = vmatpush2.bf16.msra.mxu0 0
    %227 = vmatprep.subr.bf16.mxu0 0
    %228 = vmatpush2.bf16.msra.mxu0 0
    %229 = vmatprep.mubr.bf16.mxu0 0
    %230 = vmatmul.mubr.bf16.gmra.mxu0 %v144
    %v231 = vpop.f32.mrf.mxu0
    %v232 = vadd.f32 %v148, %v231
    %v233 = vpop.f32.mrf.mxu0
    %v234 = vpop.f32.mrf.mxu0
    %v235 = vpop.f32.mrf.mxu0
    %236 = vdwg.mxu0
    %v237 = vmax.f32 %v232, 0.0
    %v238 = vpack.c.bf16 %v237, %v237
    %v239 = vlaneseq
    %v240 = vshrl.u32 %v239, 7
    %v241 = vsub.s32 2, %v240
    %v242 = vrot.slane %v88, %v241
    %v259 = vunpack.c.l.b16 %v72
    %v260 = vunpack.c.l.b16 %v73
    %v261 = vunpack.c.l.b16 %v74
    %v262 = vunpack.c.l.b16 %v75
    %v263 = vunpack.c.l.b16 %v76
    %v264 = vunpack.c.l.b16 %v77
    %v265 = vunpack.c.l.b16 %v78
    %v266 = vunpack.c.l.b16 %v79
    %v267 = vunpack.c.l.b16 %v80
    %v268 = vunpack.c.l.b16 %v81
    %v269 = vunpack.c.l.b16 %v82
    %v270 = vunpack.c.l.b16 %v83
    %v271 = vunpack.c.l.b16 %v84
    %v272 = vunpack.c.l.b16 %v85
    %v273 = vunpack.c.l.b16 %v86
    %v274 = vunpack.c.l.b16 %v87
    %v275 = vpack.c.b16 %v260, %v259
    %v276 = vpack.c.b16 %v262, %v261
    %v277 = vpack.c.b16 %v264, %v263
    %v278 = vpack.c.b16 %v266, %v265
    %v279 = vpack.c.b16 %v268, %v267
    %v280 = vpack.c.b16 %v270, %v269
    %v281 = vpack.c.b16 %v272, %v271
    %v282 = vpack.c.b16 %v274, %v273
    %291 = vmatprep.subr.bf16.mxu0 0
    %292 = vmatpush1.bf16.msra.mxu0 %v282
    %293 = vmatprep.subr.bf16.mxu0 0
    %294 = vmatpush1.bf16.msra.mxu0 %v281
    %295 = vmatprep.subr.bf16.mxu0 0
    %296 = vmatpush1.bf16.msra.mxu0 %v280
    %297 = vmatprep.subr.bf16.mxu0 0
    %298 = vmatpush1.bf16.msra.mxu0 %v279
    %299 = vmatprep.subr.bf16.mxu0 0
    %300 = vmatpush1.bf16.msra.mxu0 %v278
    %301 = vmatprep.subr.bf16.mxu0 0
    %302 = vmatpush1.bf16.msra.mxu0 %v277
    %303 = vmatprep.subr.bf16.mxu0 0
    %304 = vmatpush1.bf16.msra.mxu0 %v276
    %305 = vmatprep.subr.bf16.mxu0 0
    %306 = vmatpush1.bf16.msra.mxu0 %v275
    %307 = vmatprep.subr.bf16.mxu0 0
    %308 = vmatpush2.bf16.msra.mxu0 0
    %309 = vmatprep.subr.bf16.mxu0 0
    %310 = vmatpush2.bf16.msra.mxu0 0
    %311 = vmatprep.subr.bf16.mxu0 0
    %312 = vmatpush2.bf16.msra.mxu0 0
    %313 = vmatprep.subr.bf16.mxu0 0
    %314 = vmatpush2.bf16.msra.mxu0 0
    %315 = vmatprep.subr.bf16.mxu0 0
    %316 = vmatpush2.bf16.msra.mxu0 0
    %317 = vmatprep.subr.bf16.mxu0 0
    %318 = vmatpush2.bf16.msra.mxu0 0
    %319 = vmatprep.subr.bf16.mxu0 0
    %320 = vmatpush2.bf16.msra.mxu0 0
    %321 = vmatprep.subr.bf16.mxu0 0
    %322 = vmatpush2.bf16.msra.mxu0 0
    %323 = vmatprep.mubr.bf16.mxu0 0
    %324 = vmatmul.mubr.bf16.gmra.mxu0 %v238
    %v325 = vpop.f32.mrf.mxu0
    %v326 = vadd.f32 %v242, %v325
    %v327 = vpop.f32.mrf.mxu0
    %v328 = vpop.f32.mrf.mxu0
    %v329 = vpop.f32.mrf.mxu0
    %330 = vdwg.mxu0
    %vm331 = vcmask 23552
    %332 = vst.msk [vmem:[%s3] sm:$0xff] %vm331, %v326
    // Predicated region
    $region26: #{tpu_custom_call.1} parent=1 // pred_check
      _
    $region27: #{tpu_custom_call.1} parent=1 // pred_check_branch
      %334 = sbr.rel (0) target = $region29
    $region28: #{tpu_custom_call.1} parent=1 // pred_region
      _
    $region29: #{tpu_custom_call.1} parent=1 // pred_fallthru
      _
    // Predicated region
    $region30: #{tpu_custom_call.1} parent=1 // pred_check
      _
    $region31: #{tpu_custom_call.1} parent=1 // pred_check_branch
      %336 = sbr.rel (0) target = $region33
    $region32: #{tpu_custom_call.1} parent=1 // pred_region
      _
    $region33: #{tpu_custom_call.1} parent=1 // pred_fallthru
      _
    %337 = vsyncpa [#allocation3], 1
    %338 = vsyncpa [#allocation5], 1

</llo_original>
